<compile_context>
chip_gen: v6e
topology: v6e:2x2x1
jax: 0.10.0
libtpu: 0.0.40
codegen_flags: <defaults>
</compile_context>

<pallas_src>
import functools

import jax
import jax.numpy as jnp
import numpy as np
from jax.experimental import pallas as pl
from jax.experimental.pallas import tpu as pltpu

PACK = 4                     # rows packed per lane-dense output row (4*32 = 128)
NUM_FEATS = 3                # continuous features (module: Linear(D+3, D))
ROW_WIDTH = 1 + NUM_FEATS    # id + 3 feats = 4 columns of x


def _routing_matrix(num_types: int) -> np.ndarray:
    """S [PACK*ROW_WIDTH, PACK*(V+4)]: (x_packed @ S)[r, j*(V+4)+t] is the atom
    id of packed sub-row j for t < V, feature (t-V) for V <= t < V+3, and 0 on
    the bias lane t == V+3 (kernel turns it into 1 with a single add)."""
    v = num_types
    p = v + NUM_FEATS + 1
    s = np.zeros((PACK * ROW_WIDTH, PACK * p), dtype=np.float32)
    for j in range(PACK):
        for t in range(p):
            lane = j * p + t
            if t < v:
                s[j * ROW_WIDTH + 0, lane] = 1.0            # atom id
            elif t < v + NUM_FEATS:
                s[j * ROW_WIDTH + 1 + (t - v), lane] = 1.0  # feature t - v
            # t == v + NUM_FEATS: bias lane -> stays 0
    return s


def atom_embedding_kernel(xp_ref, s_ref, t_ref, o_ref, *, num_types):
    v = num_types
    p = v + NUM_FEATS + 1
    xp = xp_ref[...]                                                  # [TM4, 16]
    # Route packed ids / features into their lane slots (MXU pass; replaces
    # cross-lane gathers / concats that would otherwise hit the XLU).
    m = jnp.dot(xp, s_ref[...], preferred_element_type=jnp.float32)  # [TM4, 4p]
    lanes = m.shape[1]
    # Per-lane class computed once on a [1, lanes] row; broadcasting does the rest.
    t = jax.lax.broadcasted_iota(jnp.int32, (1, lanes), 1) % p
    is_id_lane = t < v                                                # [1, 4p]
    bias_lane = (t == v + NUM_FEATS).astype(jnp.float32)              # [1, 4p]
    # One-hot of the (rounded) atom id on id lanes.
    onehot = (jnp.abs(m - t.astype(jnp.float32)) < 0.5).astype(jnp.float32)
    # id lanes -> one-hot(id); feature lanes -> raw value (already in m);
    # bias lane -> routing left it at 0, so +bias_lane makes it 1.
    a = jnp.where(is_id_lane, onehot, m) + bias_lane                  # [TM4, 4p]
    # Single fused matmul: [onehot | feats | 1] @ [E@W_emb ; W_oth ; b],
    # block-diagonal over the 4 packed rows -> lane-dense [TM4, 4*D] output.
    o_ref[...] = jnp.dot(a, t_ref[...], preferred_element_type=jnp.float32)


def atom_embedding_forward(x, emb_table, fc_w, fc_b, *, tile_rows=4096):
    """x: [N, 4] f32 (col 0 = atom-type id, cols 1:4 = features);
    emb_table: [V, D]; fc_w: [D, D+3] (torch nn.Linear layout); fc_b: [D].
    Returns [N, D] f32."""
    n = x.shape[0]
    v, d = emb_table.shape
    p = v + NUM_FEATS + 1

    # --- host-side fusion: T = [E @ W_emb ; W_oth ; b]  ([V+4, D]) ---
    w_t = fc_w.T                                                      # [D+3, D]
    t_full = jnp.concatenate(
        [jnp.dot(emb_table, w_t[:d], precision=jax.lax.Precision.HIGHEST),
         w_t[d:],
         fc_b.reshape(1, d)],
        axis=0)                                                       # [p, D]
    t_bd = jnp.kron(jnp.eye(PACK, dtype=jnp.float32), t_full)         # [4p, 4D]
    s = jnp.asarray(_routing_matrix(v))                               # [16, 4p]

    # --- row tiling: TM rows per grid step (multiple of 32 so TM/4 % 8 == 0) ---
    tm = max(32, min(tile_rows, ((n + 31) // 32) * 32))
    tm -= tm % 32
    n_pad = pl.cdiv(n, tm) * tm
    if n_pad != n:
        x = jnp.pad(x, ((0, n_pad - n), (0, 0)))  # id 0 is valid; rows sliced off
    xp = x.reshape(n_pad // PACK, PACK * ROW_WIDTH)                   # [N/4, 16]
    tm4 = tm // PACK

    out_packed = pl.pallas_call(
        functools.partial(atom_embedding_kernel, num_types=v),
        out_shape=jax.ShapeDtypeStruct((n_pad // PACK, PACK * d), jnp.float32),
        grid_spec=pltpu.PrefetchScalarGridSpec(
            num_scalar_prefetch=0,
            grid=(n_pad // tm,),
            in_specs=[
                pl.BlockSpec((tm4, PACK * ROW_WIDTH), lambda i: (i, 0)),
                pl.BlockSpec((PACK * ROW_WIDTH, PACK * p), lambda i: (0, 0)),
                pl.BlockSpec((PACK * p, PACK * d), lambda i: (0, 0)),
            ],
            out_specs=pl.BlockSpec((tm4, PACK * d), lambda i: (i, 0)),
        ),
        compiler_params=pltpu.CompilerParams(
            dimension_semantics=("parallel",)),
    )(xp, s, t_bd)

    # Row-major reshape back to [N, D] (lane-dense packing is a pure view).
    return out_packed.reshape(n_pad, d)[:n]


def reference_forward(x, emb_table, fc_w, fc_b):
    atom_type = x[:, 0].astype(jnp.int32)
    emb = emb_table[atom_type]
    other = x[:, 1:].astype(jnp.float32)
    combined = jnp.concatenate([emb, other], axis=1)
    return combined @ fc_w.T + fc_b


if __name__ == "__main__":
    atom_types = [1, 6, 7, 8]              # H, C, N, O
    num_embeddings = max(atom_types) + 1   # 9
    embedding_dim = 32

    key = jax.random.PRNGKey(0)
    k_emb, k_w, k_b, k_type, k_feat = jax.random.split(key, 5)

    # Deterministic parameter init (shapes match nn.Embedding / nn.Linear).
    emb_table = jax.random.normal(k_emb, (num_embeddings, embedding_dim),
                                  dtype=jnp.float32)
    fan_in = embedding_dim + 3
    bound = 1.0 / jnp.sqrt(fan_in)
    fc_w = jax.random.uniform(k_w, (embedding_dim, embedding_dim + 3),
                              minval=-bound, maxval=bound, dtype=jnp.float32)
    fc_b = jax.random.uniform(k_b, (embedding_dim,),
                              minval=-bound, maxval=bound, dtype=jnp.float32)

    # --- small check: N=8, single tile ---
    N = 8
    type_ids = jax.random.choice(k_type, jnp.array(atom_types, jnp.int32), (N,))
    feats = jax.random.normal(k_feat, (N, 3), dtype=jnp.float32)
    x = jnp.concatenate([type_ids.astype(jnp.float32)[:, None], feats], axis=1)

    out = jax.block_until_ready(atom_embedding_forward(x, emb_table, fc_w, fc_b))
    ref = reference_forward(x, emb_table, fc_w, fc_b)
    assert out.shape == (N, embedding_dim)
    assert jnp.allclose(out, ref, atol=1e-4, rtol=1e-4), "mismatch vs reference (N=8)"

    # --- second check: multi-tile grid + row padding (N not tile-aligned) ---
    N2 = 200
    k_type2, k_feat2 = jax.random.split(jax.random.PRNGKey(1))
    type_ids2 = jax.random.choice(k_type2, jnp.array(atom_types, jnp.int32), (N2,))
    feats2 = jax.random.normal(k_feat2, (N2, 3), dtype=jnp.float32)
    x2 = jnp.concatenate([type_ids2.astype(jnp.float32)[:, None], feats2], axis=1)

    out2 = jax.block_until_ready(
        atom_embedding_forward(x2, emb_table, fc_w, fc_b, tile_rows=64))
    ref2 = reference_forward(x2, emb_table, fc_w, fc_b)
    assert out2.shape == (N2, embedding_dim)
    assert jnp.allclose(out2, ref2, atol=1e-4, rtol=1e-4), "mismatch vs reference (N=200)"

    print("KERNEL_OK")
</pallas_src>

<mosaic_0001>
module attributes {stable_mosaic.version = 11 : i64} {
  func.func @atom_embedding_kernel(%arg0: i32, %arg1: memref<8x16xf32, #tpu.memory_space<vmem>>, %arg2: memref<16x52xf32, #tpu.memory_space<vmem>>, %arg3: memref<52x128xf32, #tpu.memory_space<vmem>>, %arg4: memref<8x128xf32, #tpu.memory_space<vmem>>) attributes {dimension_semantics = [#tpu.dimension_semantics<parallel>], iteration_bounds = array<i64: 1>, scalar_prefetch = 0 : i64, scratch_operands = 0 : i64, tpu.core_type = #tpu.core_type<tc>, window_params = [{transform_indices = @transform_0, window_bounds = array<i64: 8, 16>}, {pipeline_mode = #tpu.pipeline_mode<synchronous>, transform_indices = @transform_1, window_bounds = array<i64: 16, 52>}, {pipeline_mode = #tpu.pipeline_mode<synchronous>, transform_indices = @transform_2, window_bounds = array<i64: 52, 128>}, {transform_indices = @transform_3, window_bounds = array<i64: 8, 128>}]} {
    %c0 = arith.constant 0 : index
    %c0_0 = arith.constant 0 : index
    %0 = vector.load %arg1[%c0, %c0_0] : memref<8x16xf32, #tpu.memory_space<vmem>>, vector<8x16xf32>
    %c0_1 = arith.constant 0 : index
    %c0_2 = arith.constant 0 : index
    %1 = vector.load %arg2[%c0_1, %c0_2] : memref<16x52xf32, #tpu.memory_space<vmem>>, vector<16x52xf32>
    %cst = arith.constant dense<0.000000e+00> : vector<8x52xf32>
    %2 = tpu.matmul %0, %1, %cst {dimension_numbers = #tpu.dot_dimension_numbers<[1], [0], [0], [1], [0, 0, 1, 1], [], []>} : vector<8x16xf32>, vector<16x52xf32>, vector<8x52xf32> -> vector<8x52xf32>
    %3 = tpu.iota {dimensions = array<i32: 1>} : vector<1x52xi32>
    %c13_i32 = arith.constant 13 : i32
    %c0_i32 = arith.constant 0 : i32
    %4 = arith.cmpi eq, %c13_i32, %c0_i32 : i32
    %c1_i32 = arith.constant 1 : i32
    %5 = arith.select %4, %c1_i32, %c13_i32 : i32
    %6 = vector.broadcast %5 : i32 to vector<1x52xi32>
    %7 = arith.remsi %3, %6 : vector<1x52xi32>
    %c0_i32_3 = arith.constant 0 : i32
    %8 = vector.broadcast %c0_i32_3 : i32 to vector<1x52xi32>
    %9 = arith.cmpi ne, %7, %8 : vector<1x52xi32>
    %c0_i32_4 = arith.constant 0 : i32
    %10 = vector.broadcast %c0_i32_4 : i32 to vector<1x52xi32>
    %11 = arith.cmpi slt, %7, %10 : vector<1x52xi32>
    %c0_i32_5 = arith.constant 0 : i32
    %12 = arith.cmpi slt, %5, %c0_i32_5 : i32
    %13 = vector.broadcast %12 : i1 to vector<1x52xi1>
    %14 = vector.broadcast %13 : vector<1x52xi1> to vector<1x52xi1>
    %15 = arith.xori %11, %14 : vector<1x52xi1>
    %16 = arith.andi %15, %9 : vector<1x52xi1>
    %17 = vector.broadcast %5 : i32 to vector<1x52xi32>
    %18 = arith.addi %7, %17 : vector<1x52xi32>
    %19 = arith.select %16, %18, %7 : vector<1x52xi1>, vector<1x52xi32>
    %c9_i32 = arith.constant 9 : i32
    %20 = vector.broadcast %c9_i32 : i32 to vector<1x52xi32>
    %21 = arith.cmpi slt, %19, %20 : vector<1x52xi32>
    %c12_i32 = arith.constant 12 : i32
    %22 = vector.broadcast %c12_i32 : i32 to vector<1x52xi32>
    %23 = arith.cmpi eq, %19, %22 : vector<1x52xi32>
    %24 = arith.extui %23 : vector<1x52xi1> to vector<1x52xi32>
    %25 = arith.sitofp %24 : vector<1x52xi32> to vector<1x52xf32>
    %26 = arith.sitofp %19 : vector<1x52xi32> to vector<1x52xf32>
    %27 = vector.broadcast %26 : vector<1x52xf32> to vector<8x52xf32>
    %28 = arith.subf %2, %27 : vector<8x52xf32>
    %29 = math.absf %28 : vector<8x52xf32>
    %cst_6 = arith.constant 5.000000e-01 : f32
    %30 = vector.broadcast %cst_6 : f32 to vector<8x52xf32>
    %31 = arith.cmpf olt, %29, %30 : vector<8x52xf32>
    %32 = arith.extui %31 : vector<8x52xi1> to vector<8x52xi32>
    %33 = arith.sitofp %32 : vector<8x52xi32> to vector<8x52xf32>
    %34 = vector.shape_cast %21 : vector<1x52xi1> to vector<1x52xi1>
    %35 = vector.broadcast %34 : vector<1x52xi1> to vector<8x52xi1>
    %36 = arith.select %35, %33, %2 : vector<8x52xi1>, vector<8x52xf32>
    %37 = vector.broadcast %25 : vector<1x52xf32> to vector<8x52xf32>
    %38 = arith.addf %36, %37 : vector<8x52xf32>
    %c0_7 = arith.constant 0 : index
    %c0_8 = arith.constant 0 : index
    %39 = vector.load %arg3[%c0_7, %c0_8] : memref<52x128xf32, #tpu.memory_space<vmem>>, vector<52x128xf32>
    %cst_9 = arith.constant dense<0.000000e+00> : vector<8x128xf32>
    %40 = tpu.matmul %38, %39, %cst_9 {dimension_numbers = #tpu.dot_dimension_numbers<[1], [0], [0], [1], [0, 0, 1, 1], [], []>} : vector<8x52xf32>, vector<52x128xf32>, vector<8x128xf32> -> vector<8x128xf32>
    %c0_10 = arith.constant 0 : index
    %c0_11 = arith.constant 0 : index
    %41 = vector.load %arg4[%c0_10, %c0_11] : memref<8x128xf32, #tpu.memory_space<vmem>>, vector<8x128xf32>
    tpu.vector_store %arg4[%c0_10, %c0_11], %40 {strides = array<i32>} : memref<8x128xf32, #tpu.memory_space<vmem>>, vector<8x128xf32>,
    return
  }
  func.func @transform_0(%arg0: i32) -> (i32, i32) {
    %c0_i32 = arith.constant 0 : i32
    %c0_i32_0 = arith.constant 0 : i32
    return %arg0, %c0_i32 : i32, i32
  }
  func.func @transform_1(%arg0: i32) -> (i32, i32) {
    %c0_i32 = arith.constant 0 : i32
    %c0_i32_0 = arith.constant 0 : i32
    %c0_i32_1 = arith.constant 0 : i32
    return %c0_i32, %c0_i32_0 : i32, i32
  }
  func.func @transform_2(%arg0: i32) -> (i32, i32) {
    %c0_i32 = arith.constant 0 : i32
    %c0_i32_0 = arith.constant 0 : i32
    %c0_i32_1 = arith.constant 0 : i32
    return %c0_i32, %c0_i32_0 : i32, i32
  }
  func.func @transform_3(%arg0: i32) -> (i32, i32) {
    %c0_i32 = arith.constant 0 : i32
    %c0_i32_0 = arith.constant 0 : i32
    return %arg0, %c0_i32 : i32, i32
  }
}

</mosaic_0001>

<llo_original>
// kernel: tpu_custom_call.1
$region0: #{tpu_custom_call.1}
  #allocation0 [shape = 'u32[]', space=smem, size = 0x4, offset = 0x4, fixed_abs, tag = 'smem constant byte address 0x4 - core index']
  #allocation1 [shape = 'u32[144,128]{1,0:T(1,128)}', space=vmem, size = 0x12000, scoped, tag = 'internal scratch']
  %s0 = inlined_call_operand.hbm [shape: f32[8,16], index: 0, kind: input, shape index: {}]
  %s1 = inlined_call_operand.hbm [shape: f32[16,52], index: 1, kind: input, shape index: {}]
  %s2 = inlined_call_operand.hbm [shape: f32[52,128], index: 2, kind: input, shape index: {}]
  %s3 = inlined_call_operand.hbm [shape: f32[8,128], index: 3, kind: output, shape index: {}]
  %s4 = sld [smem:[#allocation0]]
  $region34: #{tpu_custom_call.1} parent=0
    _
  %s6 = ssub.s32 1, %s4
  %s7 = scalar_select 0, %s6, %s4
  $region1: #{tpu_custom_call.1} parent=0
    #allocation2 [shape = 'u8[4096]{0}', space=vmem, size = 0x1000, scoped, tag = 'input window, operand 0, single buffered']
    #allocation3 [shape = 's32[1]{0}', space=sflag, size = 0x4, scoped, tag = 'scoped memory for tpu_custom_call.1']
    #allocation4 [shape = 's32[1]{0}', space=sflag, size = 0x4, scoped, tag = 'scoped memory for tpu_custom_call.1']
    #allocation5 [shape = 'u8[8192]{0}', space=vmem, size = 0x2000, scoped, tag = 'input window, operand 1, single buffered']
    #allocation6 [shape = 's32[1]{0}', space=sflag, size = 0x4, scoped, tag = 'scoped memory for tpu_custom_call.1']
    #allocation7 [shape = 'u8[28672]{0}', space=vmem, size = 0x7000, scoped, tag = 'input window, operand 2, single buffered']
    #allocation8 [shape = 'u8[4096]{0}', space=vmem, size = 0x1000, scoped, tag = 'output window, operand 0, single buffered']
    %8 = vsyncpa [#allocation3], 0
    %9 = vsyncpa [#allocation6], 0
    %10 = vsyncpa [#allocation4], 0
    // Predicated region
    $region2: #{tpu_custom_call.1} parent=1 // pred_check
      _
    $region3: #{tpu_custom_call.1} parent=1 // pred_check_branch
      %12 = sbr.rel (0) target = $region5
    $region4: #{tpu_custom_call.1} parent=1 // pred_region
      %s14 = ssub.s32 128, 128
      %15 = vsyncadd [#allocation3], %s14
      %s17 = sshll.u32 [#allocation2], 4
      %s18 = int_to_ptr.vmem [resolvable:$true] %s17
      %20 = dma.hbm_to_vmem [thread:$0]  %s0, 128, %s18, [#allocation3]
    $region5: #{tpu_custom_call.1} parent=1 // pred_fallthru
      _
    // Predicated region
    $region6: #{tpu_custom_call.1} parent=1 // pred_check
      _
    $region7: #{tpu_custom_call.1} parent=1 // pred_check_branch
      %22 = sbr.rel (0) target = $region9
    $region8: #{tpu_custom_call.1} parent=1 // pred_region
      %s24 = ssub.s32 256, 256
      %25 = vsyncadd [#allocation6], %s24
      %s26 = sshll.u32 [#allocation5], 4
      %s27 = int_to_ptr.vmem [resolvable:$true] %s26
      %32 = dma.hbm_to_vmem [thread:$0]  %s1, 256, %s27, [#allocation6], 128, 128, 8
    $region9: #{tpu_custom_call.1} parent=1 // pred_fallthru
      _
    // Predicated region
    $region10: #{tpu_custom_call.1} parent=1 // pred_check
      _
    $region11: #{tpu_custom_call.1} parent=1 // pred_check_branch
      %34 = sbr.rel (0) target = $region13
    $region12: #{tpu_custom_call.1} parent=1 // pred_region
      %s36 = ssub.s32 896, 896
      %37 = vsyncadd [#allocation6], %s36
      %s38 = sshll.u32 [#allocation7], 4
      %s39 = int_to_ptr.vmem [resolvable:$true] %s38
      %44 = dma.hbm_to_vmem [thread:$0]  %s2, 896, %s39, [#allocation6], 128, 128, 8
    $region13: #{tpu_custom_call.1} parent=1 // pred_fallthru
      _
    // Predicated region
    $region14: #{tpu_custom_call.1} parent=1 // pred_check
      _
    $region15: #{tpu_custom_call.1} parent=1 // pred_check_branch
      %46 = sbr.rel (0) target = $region17
    $region16: #{tpu_custom_call.1} parent=1 // pred_region
      %47 = dma.done [#allocation3], 128
    $region17: #{tpu_custom_call.1} parent=1 // pred_fallthru
      _
    // Predicated region
    $region18: #{tpu_custom_call.1} parent=1 // pred_check
      _
    $region19: #{tpu_custom_call.1} parent=1 // pred_check_branch
      %49 = sbr.rel (0) target = $region21
    $region20: #{tpu_custom_call.1} parent=1 // pred_region
      %50 = dma.done [#allocation6], 256
    $region21: #{tpu_custom_call.1} parent=1 // pred_fallthru
      _
    // Predicated region
    $region22: #{tpu_custom_call.1} parent=1 // pred_check
      _
    $region23: #{tpu_custom_call.1} parent=1 // pred_check_branch
      %52 = sbr.rel (0) target = $region25
    $region24: #{tpu_custom_call.1} parent=1 // pred_region
      %53 = dma.done [#allocation6], 896
    $region25: #{tpu_custom_call.1} parent=1 // pred_fallthru
      _
    %v54 = vld [vmem:[#allocation2] sm:$0xff]
    %v55 = vld [vmem:[#allocation5] sm:$0xff]
    %v56 = vld [vmem:[#allocation5 + $0x8] sm:$0xff]
    %vm57 = vcmask 130048
    %v59 = vsel %vm57, %v54, 0
    %61 = vmatprep.subr.mxu0 0.0
    %62 = vmatpush1.msra.mxu0 0.0
    %63 = vmatprep.subr.mxu0 0.0
    %64 = vmatpush1.msra.mxu0 0.0
    %65 = vmatprep.subr.mxu0 0.0
    %66 = vmatpush1.msra.mxu0 0.0
    %67 = vmatprep.subr.mxu0 0.0
    %68 = vmatpush1.msra.mxu0 0.0
    %69 = vmatprep.subr.mxu0 0.0
    %70 = vmatpush1.msra.mxu0 0.0
    %71 = vmatprep.subr.mxu0 0.0
    %72 = vmatpush1.msra.mxu0 0.0
    %73 = vmatprep.subr.mxu0 0.0
    %74 = vmatpush1.msra.mxu0 0.0
    %75 = vmatprep.subr.mxu0 0.0
    %76 = vmatpush1.msra.mxu0 0.0
    %77 = vmatprep.subr.mxu0 0.0
    %78 = vmatpush1.msra.mxu0 0.0
    %79 = vmatprep.subr.mxu0 0.0
    %80 = vmatpush1.msra.mxu0 0.0
    %81 = vmatprep.subr.mxu0 0.0
    %82 = vmatpush1.msra.mxu0 0.0
    %83 = vmatprep.subr.mxu0 0.0
    %84 = vmatpush1.msra.mxu0 0.0
    %85 = vmatprep.subr.mxu0 0.0
    %86 = vmatpush1.msra.mxu0 0.0
    %87 = vmatprep.subr.mxu0 0.0
    %88 = vmatpush1.msra.mxu0 0.0
    %89 = vmatprep.subr.mxu0 0.0
    %90 = vmatpush1.msra.mxu0 %v56
    %91 = vmatprep.subr.mxu0 0.0
    %92 = vmatpush1.msra.mxu0 %v55
    %93 = vmatprep.subr.mxu0 0.0
    %94 = vmatpush2.msra.mxu0 0.0
    %95 = vmatprep.subr.mxu0 0.0
    %96 = vmatpush2.msra.mxu0 0.0
    %97 = vmatprep.subr.mxu0 0.0
    %98 = vmatpush2.msra.mxu0 0.0
    %99 = vmatprep.subr.mxu0 0.0
    %100 = vmatpush2.msra.mxu0 0.0
    %101 = vmatprep.subr.mxu0 0.0
    %102 = vmatpush2.msra.mxu0 0.0
    %103 = vmatprep.subr.mxu0 0.0
    %104 = vmatpush2.msra.mxu0 0.0
    %105 = vmatprep.subr.mxu0 0.0
    %106 = vmatpush2.msra.mxu0 0.0
    %107 = vmatprep.subr.mxu0 0.0
    %108 = vmatpush2.msra.mxu0 0.0
    %109 = vmatprep.subr.mxu0 0.0
    %110 = vmatpush2.msra.mxu0 0.0
    %111 = vmatprep.subr.mxu0 0.0
    %112 = vmatpush2.msra.mxu0 0.0
    %113 = vmatprep.subr.mxu0 0.0
    %114 = vmatpush2.msra.mxu0 0.0
    %115 = vmatprep.subr.mxu0 0.0
    %116 = vmatpush2.msra.mxu0 0.0
    %117 = vmatprep.subr.mxu0 0.0
    %118 = vmatpush2.msra.mxu0 0.0
    %119 = vmatprep.subr.mxu0 0.0
    %120 = vmatpush2.msra.mxu0 0.0
    %121 = vmatprep.subr.mxu0 0.0
    %122 = vmatpush2.msra.mxu0 0.0
    %123 = vmatprep.subr.mxu0 0.0
    %124 = vmatpush2.msra.mxu0 0.0
    %125 = vmatprep.mubr.f32.mxu0 0.0
    %126 = vmatmul.mubr.f32.gmra.mxu0 %v59
    %v127 = vpop.f32.mrf.mxu0
    %v128 = vadd.f32 0.0, %v127
    %v129 = vpop.f32.mrf.mxu0
    %130 = vdwg.mxu0
    %v131 = vlaneseq
    %v132 = vand.u32 %v131, 127
    %vm133 = vcmp.lt.s32.totalorder %v132, 0
    %v134 = vsub.s32 0, %v132
    %v135 = vsel %vm133, %v134, %v132
    %v136 = vmul.u32.u64.compose %v135, 2643056798
    %v137 = vextract.low.u32 %v136
    %v138 = vextract.high.u32 %v136
    %v139 = vshrl.u32 %v138, 3
    %v140 = vmul.u32 %v139, 13
    %v141 = vsub.s32 %v135, %v140
    %v142 = vsub.s32 0, %v141
    %v143 = vsel %vm133, %v142, %v141
    %vm144 = vcmp.ne.s32.totalorder %v143, 0
    %vm145 = vcmp.lt.s32.totalorder %v143, 0
    %vm146 = vmand %vm145, %vm144
    %v147 = vadd.s32 %v143, 13
    %v148 = vsel %vm146, %v147, %v143
    %vm149 = vcmp.lt.s32.totalorder %v148, 9
    %vm150 = vcmp.eq.s32.totalorder %v148, 12
    %v151 = vsel %vm150, 1, 0
    %v152 = vcvt.s32.f32 %v151
    %v153 = vcvt.s32.f32 %v148
    %v154 = vsub.f32 %v128, %v153
    %v155 = vand.u32 2147483647, %v154
    %vm156 = vcmp.lt.f32.partialorder %v155, 0.5
    %v157 = vsel %vm156, 1, 0
    %v158 = vcvt.s32.f32 %v157
    %v159 = vsel %vm149, 1, 0
    %vm160 = vcmp.eq.s32.totalorder %v159, 1
    %v161 = vsel %vm160, %v158, %v128
    %v162 = vadd.f32 %v161, %v152
    %v163 = vld [vmem:[#allocation7] sm:$0xff]
    %v164 = vld [vmem:[#allocation7 + $0x8] sm:$0xff]
    %v165 = vld [vmem:[#allocation7 + $0x10] sm:$0xff]
    %v166 = vld [vmem:[#allocation7 + $0x18] sm:$0xff]
    %v167 = vld [vmem:[#allocation7 + $0x20] sm:$0xff]
    %v168 = vld [vmem:[#allocation7 + $0x28] sm:$0xff]
    %v169 = vld [vmem:[#allocation7 + $0x30] sm:$0xf]
    %vm170 = vcmask 424960
    %v172 = vsel %vm170, %v162, 0
    %vm174 = vcmask 1043456
    %v176 = vsel %vm174, %v169, 0
    %178 = vmatprep.subr.mxu0 0.0
    %179 = vmatpush1.msra.mxu0 0.0
    %180 = vmatprep.subr.mxu0 0.0
    %181 = vmatpush1.msra.mxu0 0.0
    %182 = vmatprep.subr.mxu0 0.0
    %183 = vmatpush1.msra.mxu0 0.0
    %184 = vmatprep.subr.mxu0 0.0
    %185 = vmatpush1.msra.mxu0 0.0
    %186 = vmatprep.subr.mxu0 0.0
    %187 = vmatpush1.msra.mxu0 0.0
    %188 = vmatprep.subr.mxu0 0.0
    %189 = vmatpush1.msra.mxu0 0.0
    %190 = vmatprep.subr.mxu0 0.0
    %191 = vmatpush1.msra.mxu0 0.0
    %192 = vmatprep.subr.mxu0 0.0
    %193 = vmatpush1.msra.mxu0 0.0
    %194 = vmatprep.subr.mxu0 0.0
    %195 = vmatpush1.msra.mxu0 0.0
    %196 = vmatprep.subr.mxu0 0.0
    %197 = vmatpush1.msra.mxu0 %v176
    %198 = vmatprep.subr.mxu0 0.0
    %199 = vmatpush1.msra.mxu0 %v168
    %200 = vmatprep.subr.mxu0 0.0
    %201 = vmatpush1.msra.mxu0 %v167
    %202 = vmatprep.subr.mxu0 0.0
    %203 = vmatpush1.msra.mxu0 %v166
    %204 = vmatprep.subr.mxu0 0.0
    %205 = vmatpush1.msra.mxu0 %v165
    %206 = vmatprep.subr.mxu0 0.0
    %207 = vmatpush1.msra.mxu0 %v164
    %208 = vmatprep.subr.mxu0 0.0
    %209 = vmatpush1.msra.mxu0 %v163
    %210 = vmatprep.subr.mxu0 0.0
    %211 = vmatpush2.msra.mxu0 0.0
    %212 = vmatprep.subr.mxu0 0.0
    %213 = vmatpush2.msra.mxu0 0.0
    %214 = vmatprep.subr.mxu0 0.0
    %215 = vmatpush2.msra.mxu0 0.0
    %216 = vmatprep.subr.mxu0 0.0
    %217 = vmatpush2.msra.mxu0 0.0
    %218 = vmatprep.subr.mxu0 0.0
    %219 = vmatpush2.msra.mxu0 0.0
    %220 = vmatprep.subr.mxu0 0.0
    %221 = vmatpush2.msra.mxu0 0.0
    %222 = vmatprep.subr.mxu0 0.0
    %223 = vmatpush2.msra.mxu0 0.0
    %224 = vmatprep.subr.mxu0 0.0
    %225 = vmatpush2.msra.mxu0 0.0
    %226 = vmatprep.subr.mxu0 0.0
    %227 = vmatpush2.msra.mxu0 0.0
    %228 = vmatprep.subr.mxu0 0.0
    %229 = vmatpush2.msra.mxu0 0.0
    %230 = vmatprep.subr.mxu0 0.0
    %231 = vmatpush2.msra.mxu0 0.0
    %232 = vmatprep.subr.mxu0 0.0
    %233 = vmatpush2.msra.mxu0 0.0
    %234 = vmatprep.subr.mxu0 0.0
    %235 = vmatpush2.msra.mxu0 0.0
    %236 = vmatprep.subr.mxu0 0.0
    %237 = vmatpush2.msra.mxu0 0.0
    %238 = vmatprep.subr.mxu0 0.0
    %239 = vmatpush2.msra.mxu0 0.0
    %240 = vmatprep.subr.mxu0 0.0
    %241 = vmatpush2.msra.mxu0 0.0
    %242 = vmatprep.mubr.f32.mxu0 0.0
    %243 = vmatmul.mubr.f32.gmra.mxu0 %v172
    %v244 = vpop.f32.mrf.mxu0
    %v245 = vadd.f32 0.0, %v244
    %v246 = vpop.f32.mrf.mxu0
    %247 = vdwg.mxu0
    %248 = vst [vmem:[#allocation8] sm:$0xff] %v245
    // Predicated region
    $region26: #{tpu_custom_call.1} parent=1 // pred_check
      _
    $region27: #{tpu_custom_call.1} parent=1 // pred_check_branch
      %250 = sbr.rel (0) target = $region29
    $region28: #{tpu_custom_call.1} parent=1 // pred_region
      %s252 = ssub.s32 128, 128
      %253 = vsyncadd [#allocation4], %s252
      %s255 = sshll.u32 [#allocation8], 4
      %s256 = int_to_ptr.vmem [resolvable:$true] %s255
      %258 = dma.vmem_to_hbm [thread:$0]  %s256, 128, %s3, [#allocation4]
    $region29: #{tpu_custom_call.1} parent=1 // pred_fallthru
      _
    // Predicated region
    $region30: #{tpu_custom_call.1} parent=1 // pred_check
      _
    $region31: #{tpu_custom_call.1} parent=1 // pred_check_branch
      %260 = sbr.rel (0) target = $region33
    $region32: #{tpu_custom_call.1} parent=1 // pred_region
      %261 = dma.done [#allocation4], 128
    $region33: #{tpu_custom_call.1} parent=1 // pred_fallthru
      _
    %262 = vsyncpa [#allocation3], 1
    %263 = vsyncpa [#allocation6], 1
    %264 = vsyncpa [#allocation4], 1

</llo_original>
